<compile_context>
chip_gen: v5e
topology: v5e:2x2
jax: 0.10.0
libtpu: 0.0.40
codegen_flags: <defaults>
</compile_context>

<pallas_src>
import jax
import jax.numpy as jnp
from jax.experimental import pallas as pl
from jax.experimental.pallas import tpu as pltpu

_LANE = 128
_TILE_BYTES = 4 * 1024 * 1024      # per-buffer tile footprint (~4 MiB)
_ROW_BURST_BYTES = 8192            # target per-row contiguous DMA burst


def _chomp_copy_kernel(x_ref, o_ref):
    # Pure tile copy: both refs are the same (tr, tl) window of the kept
    # region; Pallas masks the boundary (remainder / padded) tiles.
    o_ref[...] = x_ref[...]


def _round_up(n: int, m: int) -> int:
    return ((n + m - 1) // m) * m


def chomp1d(x: jax.Array, chomp_size: int) -> jax.Array:
    """Equivalent of Chomp1d(chomp_size).forward(x) for x of shape (B, C, L)."""
    assert chomp_size >= 0, "chomp_size must be non-negative"
    if chomp_size == 0:
        # Identity path — exactly what the PyTorch module does; no kernel,
        # no HBM round trip.
        return x

    B, C, L = x.shape
    l_out = L - chomp_size
    assert l_out > 0, "chomp_size must be smaller than the sequence length"

    rows = B * C
    x2 = x.reshape(rows, L)  # contiguous view, no data movement

    itemsize = jnp.dtype(x.dtype).itemsize
    # Sublane packing: 8 rows for 32-bit, 16 for bf16, 32 for int8/fp8.
    sublane = max(8, 32 // max(1, itemsize))

    # ---- Column tile: byte-budgeted cap, then balanced across tiles ----
    # Lane cap so each row's contiguous burst is ~8 KiB regardless of dtype
    # (2048 lanes f32, 4096 bf16, 8192 int8) — same byte footprint per dtype.
    tl_cap = max(_LANE, (_ROW_BURST_BYTES // itemsize) // _LANE * _LANE)
    n_col = -(-l_out // tl_cap)                       # ceil(l_out / tl_cap)
    tl = _round_up(-(-l_out // n_col), _LANE)         # balanced, lane-dense

    # ---- Row tile: fill the remaining byte budget ----
    tr_budget = max(sublane, _TILE_BYTES // (tl * itemsize))
    if rows <= tr_budget:
        tr = rows                                     # full dim: always legal
    else:
        tr = max(sublane, (tr_budget // sublane) * sublane)

    grid = (pl.cdiv(rows, tr), pl.cdiv(l_out, tl))

    # Input columns actually DMA'd (last column tile is padded up to tl,
    # reading into the chomped tail / masked OOB region).
    cols_read = min(L, grid[1] * tl)

    out2 = pl.pallas_call(
        _chomp_copy_kernel,
        out_shape=jax.ShapeDtypeStruct((rows, l_out), x.dtype),
        grid_spec=pltpu.PrefetchScalarGridSpec(
            num_scalar_prefetch=0,
            grid=grid,
            # Same block + index_map for input and output: only the kept
            # window (plus at most one partial tail tile) is ever DMA'd.
            # Default double buffering — no deeper pipeline; there is no
            # compute to hide, VMEM is better spent on bigger tiles.
            in_specs=[pl.BlockSpec((tr, tl), lambda r, c: (r, c))],
            out_specs=pl.BlockSpec((tr, tl), lambda r, c: (r, c)),
        ),
        compiler_params=pltpu.CompilerParams(
            # Both axes independent; v7x's two TensorCores can split them.
            # TODO(synk): verify in an xprof trace that both v7x TCs share
            # the grid; if not, switch the row axis to pltpu.CORE_PARALLEL.
            dimension_semantics=("parallel", "parallel"),
            # 4 MiB tiles * (in+out) * double buffering = 16 MiB of VMEM:
            # raise the scoped limit explicitly so this is legal on v5e
            # (16 MiB default) and still leaves headroom on v7x (32 MiB
            # scoped / 64 MiB physical per TC).
            vmem_limit_bytes=32 * 1024 * 1024,
        ),
        cost_estimate=pl.CostEstimate(
            flops=0,
            transcendentals=0,
            bytes_accessed=rows * (cols_read + l_out) * itemsize,
        ),
    )(x2)

    return out2.reshape(B, C, l_out)

    # TODO(synk): in a full TCN, fuse this slice into the producing conv's
    # output BlockSpec (or emit a single strided HBM->HBM DMA) instead of
    # running it as a standalone copy kernel.


if __name__ == "__main__":
    # Small shapes consistent with a 1-D causal conv activation: (B, C, L).
    B, C, L = 2, 4, 16
    chomp_size = 3

    key = jax.random.PRNGKey(0)
    x = jax.random.normal(key, (B, C, L), dtype=jnp.float32)

    out = jax.block_until_ready(chomp1d(x, chomp_size))
    ref = x[:, :, :-chomp_size]
    assert out.shape == (B, C, L - chomp_size), out.shape
    assert jnp.array_equal(out, ref), "mismatch vs reference slice"

    # Unaligned shape (rows and l_out not multiples of 8/128) — masked edges.
    x_big = jax.random.normal(jax.random.PRNGKey(1), (9, 30, 1200), dtype=jnp.float32)
    out_big = jax.block_until_ready(chomp1d(x_big, 37))
    assert jnp.array_equal(out_big, x_big[:, :, :-37]), "unaligned mismatch"

    # Multi row-tile grid (rows > byte-budgeted row tile).
    x_mr = jax.random.normal(jax.random.PRNGKey(2), (16, 64, 2048), dtype=jnp.float32)
    out_mr = jax.block_until_ready(chomp1d(x_mr, 48))
    assert jnp.array_equal(out_mr, x_mr[:, :, :-48]), "multi-row-tile mismatch"

    # Multi (balanced) column-tile grid.
    x_mc = jax.random.normal(jax.random.PRNGKey(3), (4, 16, 5000), dtype=jnp.float32)
    out_mc = jax.block_until_ready(chomp1d(x_mc, 100))
    assert jnp.array_equal(out_mc, x_mc[:, :, :-100]), "multi-col-tile mismatch"

    # bf16 path (byte-budgeted tiles double the lane width for 2-byte dtypes).
    xb = x.astype(jnp.bfloat16)
    outb = jax.block_until_ready(chomp1d(xb, chomp_size))
    assert jnp.array_equal(outb, xb[:, :, :-chomp_size]), "bf16 mismatch"

    # chomp_size == 0 identity path (matches the PyTorch module's branch).
    out0 = jax.block_until_ready(chomp1d(x, 0))
    assert jnp.array_equal(out0, x), "identity path mismatch"

    print("KERNEL_OK")
</pallas_src>

<mosaic_0001>
module attributes {stable_mosaic.version = 11 : i64} {
  func.func @_chomp_copy_kernel(%arg0: i32, %arg1: i32, %arg2: memref<8x128xf32, #tpu.memory_space<vmem>>, %arg3: memref<8x128xf32, #tpu.memory_space<vmem>>) attributes {dimension_semantics = [#tpu.dimension_semantics<parallel>, #tpu.dimension_semantics<parallel>], iteration_bounds = array<i64: 1, 1>, scalar_prefetch = 0 : i64, scratch_operands = 0 : i64, tpu.core_type = #tpu.core_type<tc>, window_params = [{transform_indices = @transform_0, window_bounds = array<i64: 8, 128>}, {transform_indices = @transform_1, window_bounds = array<i64: 8, 128>}]} {
    %c0 = arith.constant 0 : index
    %c0_0 = arith.constant 0 : index
    %0 = vector.load %arg2[%c0, %c0_0] : memref<8x128xf32, #tpu.memory_space<vmem>>, vector<8x128xf32>
    %c0_1 = arith.constant 0 : index
    %c0_2 = arith.constant 0 : index
    %1 = vector.load %arg3[%c0_1, %c0_2] : memref<8x128xf32, #tpu.memory_space<vmem>>, vector<8x128xf32>
    tpu.vector_store %arg3[%c0_1, %c0_2], %0 {strides = array<i32>} : memref<8x128xf32, #tpu.memory_space<vmem>>, vector<8x128xf32>,
    return
  }
  func.func @transform_0(%arg0: i32, %arg1: i32) -> (i32, i32) {
    %c0_i32 = arith.constant 0 : i32
    return %arg0, %arg1 : i32, i32
  }
  func.func @transform_1(%arg0: i32, %arg1: i32) -> (i32, i32) {
    %c0_i32 = arith.constant 0 : i32
    return %arg0, %arg1 : i32, i32
  }
}

</mosaic_0001>

<llo_original>
// kernel: tpu_custom_call.1
$region0: #{tpu_custom_call.1}
  #allocation0 [shape = 'u32[]', space=smem, size = 0x4, offset = 0x4, fixed_abs, tag = 'smem constant byte address 0x4 - core index']
  #allocation1 [shape = 'u32[72,128]{1,0:T(1,128)}', space=vmem, size = 0x9000, scoped, tag = 'internal scratch']
  %s0 = inlined_call_operand.hbm [shape: f32[8,16], index: 0, kind: input, shape index: {}]
  %s1 = inlined_call_operand.hbm [shape: f32[8,13], index: 1, kind: output, shape index: {}]
  %s2 = sld [smem:[#allocation0]]
  $region18: #{tpu_custom_call.1} parent=0
    _
  %s4 = ssub.s32 1, %s2
  %s5 = scalar_select 0, %s4, %s2
  $region1: #{tpu_custom_call.1} parent=0
    #allocation2 [shape = 'u8[4096]{0}', space=vmem, size = 0x1000, scoped, tag = 'input window, operand 0, single buffered']
    #allocation3 [shape = 's32[1]{0}', space=sflag, size = 0x4, scoped, tag = 'scoped memory for tpu_custom_call.1']
    #allocation4 [shape = 's32[1]{0}', space=sflag, size = 0x4, scoped, tag = 'scoped memory for tpu_custom_call.1']
    #allocation5 [shape = 'u8[4096]{0}', space=vmem, size = 0x1000, scoped, tag = 'output window, operand 0, single buffered']
    %6 = vsyncpa [#allocation3], 0
    %7 = vsyncpa [#allocation4], 0
    // Predicated region
    $region2: #{tpu_custom_call.1} parent=1 // pred_check
      _
    $region3: #{tpu_custom_call.1} parent=1 // pred_check_branch
      %9 = sbr.rel (0) target = $region5
    $region4: #{tpu_custom_call.1} parent=1 // pred_region
      %11 = vsyncadd [#allocation3], 0
      %s13 = sshll.u32 %s0, 4
      %s14 = int_to_ptr.hbm [resolvable:$true] %s13
      %s15 = sshll.u32 [#allocation2], 4
      %s16 = int_to_ptr.vmem [resolvable:$true] %s15
      %18 = dma.hbm_to_vmem [thread:$0]  %s14, 128, %s16, [#allocation3]
    $region5: #{tpu_custom_call.1} parent=1 // pred_fallthru
      _
    // Predicated region
    $region6: #{tpu_custom_call.1} parent=1 // pred_check
      _
    $region7: #{tpu_custom_call.1} parent=1 // pred_check_branch
      %20 = sbr.rel (0) target = $region9
    $region8: #{tpu_custom_call.1} parent=1 // pred_region
      %22 = dma.done [#allocation3], 128
    $region9: #{tpu_custom_call.1} parent=1 // pred_fallthru
      _
    %v23 = vld [vmem:[#allocation2] sm:$0xff]
    %24 = vst [vmem:[#allocation5] sm:$0xff] %v23
    // Predicated region
    $region10: #{tpu_custom_call.1} parent=1 // pred_check
      _
    $region11: #{tpu_custom_call.1} parent=1 // pred_check_branch
      %26 = sbr.rel (0) target = $region13
    $region12: #{tpu_custom_call.1} parent=1 // pred_region
      %28 = vsyncadd [#allocation4], 0
      %s30 = sshll.u32 [#allocation5], 4
      %s31 = int_to_ptr.vmem [resolvable:$true] %s30
      %s32 = sshll.u32 %s1, 4
      %s33 = int_to_ptr.hbm [resolvable:$true] %s32
      %35 = dma.vmem_to_hbm [thread:$0]  %s31, 128, %s33, [#allocation4]
    $region13: #{tpu_custom_call.1} parent=1 // pred_fallthru
      _
    // Predicated region
    $region14: #{tpu_custom_call.1} parent=1 // pred_check
      _
    $region15: #{tpu_custom_call.1} parent=1 // pred_check_branch
      %37 = sbr.rel (0) target = $region17
    $region16: #{tpu_custom_call.1} parent=1 // pred_region
      %39 = dma.done [#allocation4], 128
    $region17: #{tpu_custom_call.1} parent=1 // pred_fallthru
      _
    %40 = vsyncpa [#allocation3], 1
    %41 = vsyncpa [#allocation4], 1

</llo_original>
